<compile_context>
chip_gen: v7x
topology: tpu7x:2x2x1
jax: 0.10.0
libtpu: 0.0.40
codegen_flags: <defaults>
</compile_context>

<pallas_src>
import jax
import jax.numpy as jnp
from jax import lax
from jax.experimental import pallas as pl
from jax.experimental.pallas import tpu as pltpu


def _round_up(x, m):
    return (x + m - 1) // m * m


def _graph_attn_bias_kernel(w_ref, edge_ref, base_ref, out_ref):
    # w_ref   : [H, D*H]            bf16  mixing weights W_d^T, flat over (d, h)
    # edge_ref: [Gb, D*H, tile_p]   bf16  (1/hop)-scaled multi-hop edge emb.^T
    #                                     (zero on the graph-token border)
    # base_ref: [Gb, H, tile_p]     f32   2*attn_bias + spatial / virtual bias
    # out_ref : [Gb, H, tile_p]     f32   final bias, already [G, H, P] layout
    gb = edge_ref.shape[0]
    w = w_ref[...]

    def one_graph(g):
        out_ref[g] = base_ref[g] + jnp.dot(
            w, edge_ref[g], preferred_element_type=jnp.float32)

    if gb <= 8:                      # small static unroll
        for g in range(gb):
            one_graph(g)
    else:                            # bounded code size for large graph blocks
        def body(g, carry):
            one_graph(g)
            return carry
        lax.fori_loop(0, gb, body, 0)


def graph_attn_bias_forward(params, batched_data, *, num_heads,
                            multi_hop_max_dist, lane_tile=16384):
    """edge_type='multi_hop' forward. Returns [G, H, n_node+1, n_node+1] f32."""
    attn_bias = batched_data['attn_bias']        # [G, N1, N1] f32
    spatial_pos = batched_data['spatial_pos']    # [G, n, n]   i32
    x = batched_data['x']                        # [G, n, ...] (only shapes used)
    edge_input = batched_data['edge_input']      # [G, n, n, E_D, F] i32

    G, n = x.shape[:2]
    N1 = n + 1
    H = num_heads
    P = N1 * N1

    # -------- wrapper glue: embedding gathers + padding (fused by XLA) -------
    # base = 2*attn_bias + [inner block: spatial-pos bias, border: token t]
    # (t appears once everywhere on row 0 / col 0, matching the reference adds)
    spb = params['spatial_pos_encoder'][spatial_pos]              # [G,n,n,H]
    spb_t = spb.transpose(0, 3, 1, 2)                             # [G,H,n,n]
    t = params['graph_token_virtual_distance'].reshape(H)
    base = jnp.broadcast_to(t[None, :, None, None], (G, H, N1, N1))
    base = base.at[:, :, 1:, 1:].set(spb_t)
    base = (base + 2.0 * attn_bias[:, None]).astype(jnp.float32)  # [G,H,N1,N1]
    base_gp = base.reshape(G, H, P)

    # hop-count reciprocal, folded directly into the edge stream
    sp_ = jnp.where(spatial_pos == 0, 1, spatial_pos)
    sp_ = jnp.where(sp_ > 1, sp_ - 1, sp_)
    sp_ = jnp.clip(sp_, 0, multi_hop_max_dist)
    recip = 1.0 / sp_.astype(jnp.float32)                         # [G,n,n]

    # multi-hop edge embeddings (mean over edge features) * 1/hop, cast to bf16
    # BEFORE the pad/permute so the dominant wrapper copy runs at half width.
    ei = edge_input[:, :, :, :multi_hop_max_dist, :]              # [G,n,n,D,F]
    D = ei.shape[3]
    e_emb = params['edge_encoder'][ei].mean(axis=-2)              # [G,n,n,D,H]
    e_emb = (e_emb * recip[..., None, None]).astype(jnp.bfloat16)
    # zero border pad AFTER the recip multiply -> graph-token row/col adds 0
    e_emb = jnp.pad(e_emb, ((0, 0), (1, 0), (1, 0), (0, 0), (0, 0)))
    edge_gp = e_emb.transpose(0, 3, 4, 1, 2).reshape(G, D * H, P)  # [G,D*H,P]

    # W_d^T flattened over (d, h):  disw_T[h', d*H + h] = W_d[h, h']
    dis_w = params['edge_dis_encoder'].reshape(-1, H, H)[:D]      # [D,H,H]
    disw_T = dis_w.transpose(2, 0, 1).reshape(H, D * H).astype(jnp.bfloat16)

    # -------- tiling: lanes = per-graph (N1*N1) grid; graphs block-stacked ---
    lane_tile = max(128, _round_up(lane_tile, 128))
    P_pad0 = _round_up(P, 128)
    # keep the grid at >= ~8 steps so both v7x TensorCores get work
    lane_budget = max(128, min(lane_tile,
                               _round_up(pl.cdiv(G * P_pad0, 8), 128)))
    if P_pad0 <= lane_budget:
        tile_p = P_pad0                                   # whole graph per tile
        gb = min(G, max(1, lane_budget // tile_p))        # graphs per step
    else:
        n_chunks = pl.cdiv(P_pad0, lane_budget)           # split P evenly
        tile_p = _round_up(pl.cdiv(P_pad0, n_chunks), 128)
        gb = 1
    P_pad = _round_up(P_pad0, tile_p)
    G_pad = _round_up(G, gb)

    if P_pad != P or G_pad != G:
        edge_gp = jnp.pad(edge_gp, ((0, G_pad - G), (0, 0), (0, P_pad - P)))
        base_gp = jnp.pad(base_gp, ((0, G_pad - G), (0, 0), (0, P_pad - P)))

    grid = (G_pad // gb, P_pad // tile_p)
    out = pl.pallas_call(
        _graph_attn_bias_kernel,
        out_shape=jax.ShapeDtypeStruct((G_pad, H, P_pad), jnp.float32),
        grid=grid,
        in_specs=[
            pl.BlockSpec((H, D * H), lambda g, p: (0, 0)),          # weights
            pl.BlockSpec((gb, D * H, tile_p), lambda g, p: (g, 0, p)),
            pl.BlockSpec((gb, H, tile_p), lambda g, p: (g, 0, p)),  # base
        ],
        out_specs=pl.BlockSpec((gb, H, tile_p), lambda g, p: (g, 0, p)),
        compiler_params=pltpu.CompilerParams(
            dimension_semantics=("parallel", "parallel")),
        # accumulate in place into the base buffer (same layout & dtype):
        # avoids materializing a second [G_pad, H, P_pad] f32 HBM buffer.
        input_output_aliases={2: 0},
    )(disw_T, edge_gp, base_gp)

    # Output already has the PyTorch (G, H, row, col) ordering; slice only
    # strips padding (a no-op when P and G needed none) and reshape is free.
    return out[:G, :, :P].reshape(G, H, N1, N1)


def reference_forward(params, batched_data, *, num_heads, multi_hop_max_dist):
    """Pure-JAX transcription of the PyTorch forward (multi_hop path)."""
    attn_bias = batched_data['attn_bias']
    spatial_pos = batched_data['spatial_pos']
    x = batched_data['x']
    edge_input = batched_data['edge_input']
    G, n = x.shape[:2]
    H = num_heads

    gab = jnp.broadcast_to(attn_bias[:, None, :, :],
                           (G, H) + attn_bias.shape[1:])
    spb = params['spatial_pos_encoder'][spatial_pos].transpose(0, 3, 1, 2)
    gab = gab.at[:, :, 1:, 1:].add(spb)
    t = params['graph_token_virtual_distance'].reshape(1, H, 1)
    gab = gab.at[:, :, 1:, 0].add(t)
    gab = gab.at[:, :, 0, :].add(t)

    sp_ = jnp.where(spatial_pos == 0, 1, spatial_pos)
    sp_ = jnp.where(sp_ > 1, sp_ - 1, sp_)
    sp_ = jnp.clip(sp_, 0, multi_hop_max_dist)
    ei = edge_input[:, :, :, :multi_hop_max_dist, :]
    e = params['edge_encoder'][ei].mean(-2)                       # [G,n,n,D,H]
    max_dist = e.shape[-2]
    e_flat = e.transpose(3, 0, 1, 2, 4).reshape(max_dist, -1, H)
    w = params['edge_dis_encoder'].reshape(-1, H, H)[:max_dist]
    e_flat = jnp.einsum('dph,dhk->dpk', e_flat, w)
    e2 = e_flat.reshape(max_dist, G, n, n, H).transpose(1, 2, 3, 0, 4)
    e2 = (e2.sum(-2) / sp_.astype(jnp.float32)[..., None]).transpose(0, 3, 1, 2)
    gab = gab.at[:, :, 1:, 1:].add(e2)
    gab = gab + attn_bias[:, None, :, :]
    return gab


def init_graph_attn_bias_params(key, *, num_heads, num_edges, num_spatial,
                                num_edge_dis):
    # Mirrors init_params(): every nn.Embedding weight ~ N(0, 0.02) — the
    # padding_idx rows are overwritten by normal_ in the reference, so we do
    # NOT zero them either.
    k1, k2, k3, k4 = jax.random.split(key, 4)
    std = 0.02
    return {
        'edge_encoder':
            std * jax.random.normal(k1, (num_edges + 1, num_heads), jnp.float32),
        'edge_dis_encoder':
            std * jax.random.normal(
                k2, (num_edge_dis * num_heads * num_heads, 1), jnp.float32),
        'spatial_pos_encoder':
            std * jax.random.normal(k3, (num_spatial, num_heads), jnp.float32),
        'graph_token_virtual_distance':
            std * jax.random.normal(k4, (1, num_heads), jnp.float32),
    }


if __name__ == "__main__":
    # Small, forward-consistent shapes.
    num_heads = 8
    num_edges = 20
    num_spatial = 16
    num_edge_dis = 8
    multi_hop_max_dist = 4     # edge_type == 'multi_hop'
    G, n = 2, 15               # n_graph, n_node  -> attention grid 16 x 16
    N1 = n + 1
    E_D, F = 5, 3              # stored max dist (sliced to 4), edge feature dim

    key = jax.random.PRNGKey(0)
    kp, ka, ks, kx, ke, kt = jax.random.split(key, 6)
    params = init_graph_attn_bias_params(
        kp, num_heads=num_heads, num_edges=num_edges,
        num_spatial=num_spatial, num_edge_dis=num_edge_dis)

    batched_data = {
        'attn_bias': jax.random.normal(ka, (G, N1, N1), jnp.float32),
        'spatial_pos': jax.random.randint(ks, (G, n, n), 0, num_spatial,
                                          jnp.int32),
        'x': jax.random.randint(kx, (G, n, 1), 0, 10, jnp.int32),
        'edge_input': jax.random.randint(ke, (G, n, n, E_D, F), 0,
                                         num_edges + 1, jnp.int32),
        # attn_edge_type is only used on the non-multi_hop branch (unused here).
        'attn_edge_type': jax.random.randint(kt, (G, n, n, F), 0,
                                             num_edges + 1, jnp.int32),
    }

    out = graph_attn_bias_forward(params, batched_data, num_heads=num_heads,
                                  multi_hop_max_dist=multi_hop_max_dist)
    jax.block_until_ready(out)

    ref = reference_forward(params, batched_data, num_heads=num_heads,
                            multi_hop_max_dist=multi_hop_max_dist)
    assert out.shape == (G, num_heads, N1, N1)
    assert out.dtype == jnp.float32
    # Tolerance accounts for the bf16 edge-embedding stream feeding the MXU
    # (f32 accumulation); observed error is ~1e-5, budget 2e-4.
    assert jnp.allclose(out, ref, atol=2e-4, rtol=2e-4)
    print("KERNEL_OK")
</pallas_src>

<mosaic_0001>
module attributes {stable_mosaic.version = 11 : i64} {
  func.func @_graph_attn_bias_kernel(%arg0: i32, %arg1: i32, %arg2: memref<8x32xbf16, #tpu.memory_space<vmem>>, %arg3: memref<1x32x128xbf16, #tpu.memory_space<vmem>>, %arg4: memref<1x8x128xf32, #tpu.memory_space<vmem>>, %arg5: memref<1x8x128xf32, #tpu.memory_space<vmem>>) attributes {dimension_semantics = [#tpu.dimension_semantics<parallel>, #tpu.dimension_semantics<parallel>], iteration_bounds = array<i64: 2, 2>, scalar_prefetch = 0 : i64, scratch_operands = 0 : i64, tpu.core_type = #tpu.core_type<tc>, window_params = [{pipeline_mode = #tpu.pipeline_mode<synchronous>, transform_indices = @transform_0, window_bounds = array<i64: 8, 32>}, {transform_indices = @transform_1, window_bounds = array<i64: 1, 32, 128>}, {transform_indices = @transform_2, window_bounds = array<i64: 1, 8, 128>}, {transform_indices = @transform_3, window_bounds = array<i64: 1, 8, 128>}]} {
    %c0 = arith.constant 0 : index
    %c0_0 = arith.constant 0 : index
    %0 = vector.load %arg2[%c0, %c0_0] : memref<8x32xbf16, #tpu.memory_space<vmem>>, vector<8x32xbf16>
    %c0_1 = arith.constant 0 : index
    %c0_2 = arith.constant 0 : index
    %c0_3 = arith.constant 0 : index
    %1 = vector.load %arg4[%c0_1, %c0_2, %c0_3] : memref<1x8x128xf32, #tpu.memory_space<vmem>>, vector<1x8x128xf32>
    %2 = vector.shape_cast %1 : vector<1x8x128xf32> to vector<8x128xf32>
    %c0_4 = arith.constant 0 : index
    %c0_5 = arith.constant 0 : index
    %c0_6 = arith.constant 0 : index
    %3 = vector.load %arg3[%c0_4, %c0_5, %c0_6] : memref<1x32x128xbf16, #tpu.memory_space<vmem>>, vector<1x32x128xbf16>
    %4 = vector.shape_cast %3 : vector<1x32x128xbf16> to vector<32x128xbf16>
    %cst = arith.constant dense<0.000000e+00> : vector<8x128xf32>
    %5 = tpu.matmul %0, %4, %cst {dimension_numbers = #tpu.dot_dimension_numbers<[1], [0], [0], [1], [0, 0, 1, 1], [], []>} : vector<8x32xbf16>, vector<32x128xbf16>, vector<8x128xf32> -> vector<8x128xf32>
    %6 = arith.addf %2, %5 : vector<8x128xf32>
    %c0_7 = arith.constant 0 : index
    %c0_8 = arith.constant 0 : index
    %c0_9 = arith.constant 0 : index
    %7 = vector.load %arg5[%c0_7, %c0_8, %c0_9] : memref<1x8x128xf32, #tpu.memory_space<vmem>>, vector<1x8x128xf32>
    %8 = vector.shape_cast %7 : vector<1x8x128xf32> to vector<8x128xf32>
    %9 = vector.shape_cast %6 : vector<8x128xf32> to vector<1x8x128xf32>
    tpu.vector_store %arg5[%c0_7, %c0_8, %c0_9], %9 {strides = array<i32>} : memref<1x8x128xf32, #tpu.memory_space<vmem>>, vector<1x8x128xf32>,
    return
  }
  func.func @transform_0(%arg0: i32, %arg1: i32) -> (i32, i32) {
    %c0_i32 = arith.constant 0 : i32
    %c0_i32_0 = arith.constant 0 : i32
    %c0_i32_1 = arith.constant 0 : i32
    return %c0_i32, %c0_i32_0 : i32, i32
  }
  func.func @transform_1(%arg0: i32, %arg1: i32) -> (i32, i32, i32) {
    %c0_i32 = arith.constant 0 : i32
    %c0_i32_0 = arith.constant 0 : i32
    return %arg0, %c0_i32, %arg1 : i32, i32, i32
  }
  func.func @transform_2(%arg0: i32, %arg1: i32) -> (i32, i32, i32) {
    %c0_i32 = arith.constant 0 : i32
    %c0_i32_0 = arith.constant 0 : i32
    return %arg0, %c0_i32, %arg1 : i32, i32, i32
  }
  func.func @transform_3(%arg0: i32, %arg1: i32) -> (i32, i32, i32) {
    %c0_i32 = arith.constant 0 : i32
    %c0_i32_0 = arith.constant 0 : i32
    return %arg0, %c0_i32, %arg1 : i32, i32, i32
  }
}

</mosaic_0001>

<llo_original>
// kernel: tpu_custom_call.1
$region0: #{tpu_custom_call.1}
  #allocation0 [shape = 'u32[]', space=smem, size = 0x4, offset = 0x4, fixed_abs, tag = 'smem constant byte address 0x4 - core index']
  #allocation1 [shape = 'u32[144,128]{1,0:T(1,128)}', space=vmem, size = 0x12000, scoped, tag = 'internal scratch']
  %s0 = inlined_call_operand.vmem [shape: bf16[8,32], index: 0, kind: input, shape index: {}]
  %s1 = inlined_call_operand.vmem [shape: bf16[2,32,256], index: 1, kind: input, shape index: {}]
  %s2 = inlined_call_operand.hbm [shape: f32[2,8,256], index: 2, kind: input, shape index: {}, may-alias: {2,3}]
  %s3 = inlined_call_operand.hbm [shape: f32[2,8,256], index: 3, kind: output, shape index: {}, may-alias: {2,3}]
  %s4 = sld [smem:[#allocation0]]
  $region90: #{tpu_custom_call.1} parent=0
    _
  %s6 = ssub.s32 1, %s4
  %s7 = scalar_select 0, %s6, %s4
  $region1: #{tpu_custom_call.1} parent=0
    #allocation2 [shape = 'u8[16384]{0}', space=vmem, size = 0x4000, scoped, tag = 'input window, operand 1']
    #allocation3 [shape = 'u8[8192]{0}', space=vmem, size = 0x2000, scoped, tag = 'input window, operand 2']
    #allocation4 [shape = 's32[2]{0}', space=sflag, size = 0x8, scoped, tag = 'scoped memory for tpu_custom_call.1']
    #allocation5 [shape = 's32[2]{0}', space=sflag, size = 0x8, scoped, tag = 'scoped memory for tpu_custom_call.1']
    #allocation6 [shape = 'u8[8192]{0}', space=vmem, size = 0x2000, scoped, tag = 'output window, operand 0']
    %8 = vsyncpa [#allocation4], 0
    %s9 = scalar_lea.sflag [#allocation4], 1
    %10 = vsyncpa %s9, 0
    %11 = vsyncpa [#allocation5], 0
    %s12 = scalar_lea.sflag [#allocation5], 1
    %13 = vsyncpa %s12, 0
    loop: start=0, step=1, limit=6
    $region2: #{tpu_custom_call.1} parent=1 // loop_pre_header
      _
    $region3: #{tpu_custom_call.1} parent=1 // loop_header
      %s15 = sphi 0, %s19
      %p16 = scmp.ge.s32.totalorder %s15, 6
      %s22 = sphi 0, %s34
      %s23 = sphi 0, %s30
      %s24 = sphi 0, %s22
      %s25 = sphi 0, %s23
      %s26 = sphi 0, %s24
      %s27 = sphi 0, %s25
      %s35 = sphi 0, %s35
      %s37 = sphi 0, %s35
      %s38 = sphi 0, %s37
      %s52 = sphi 0, %s38
      %s60 = sphi 0, %s62
      %s63 = sphi 0, %s60
      %s64 = sphi 0, %s63
      %s80 = sphi 0, %s64
      %s88 = sphi 0, %s90
      %s91 = sphi 0, %s88
      %s92 = sphi 0, %s91
      %s108 = sphi 0, %s92
      %s116 = sphi 0, %s118
      %s119 = sphi 0, %s116
      %s120 = sphi 0, %s119
      %s136 = sphi 0, %s120
    $region4: #{tpu_custom_call.1} parent=1 // loop_header_branch
      %18 = sbr.rel (%p16) target = $region8
    $region5: #{tpu_custom_call.1} parent=1 // loop_body
      %s20 = ssub.s32 %s15, 1
      %s21 = ssub.s32 %s15, 2
      %s28 = sadd.s32 1, %s23
      %p29 = scmp.ge.s32.totalorder %s28, 2
      %s30 = scalar_select %p29, 0, %s28
      %s31 = sadd.s32 1, %s22
      %s32 = scalar_select %p29, %s31, %s22
      %p33 = scmp.ge.s32.totalorder %s32, 2
      %s34 = scalar_select %p33, 0, %s32
      %s36 = sadd.s32 %s35, 1
      %p39 = scmp.eq.s32.totalorder %s15, 3
      %p40 = scmp.ne.s32.totalorder %s35, %s37
      %p41 = scmp.eq.s32.totalorder %s15, 0
      %p42 = por %p40, %p41
      %p43 = scmp.ne.s32.totalorder %s35, %s37
      %p44 = scmp.eq.s32.totalorder %s20, 3
      %p45 = por %p43, %p44
      %p46 = scmp.ne.s32.totalorder %s37, %s38
      %p47 = scmp.eq.s32.totalorder %s20, 0
      %p48 = por %p46, %p47
      %p49 = scmp.ne.s32.totalorder %s37, %s38
      %p50 = scmp.eq.s32.totalorder %s21, 3
      %p51 = por %p49, %p50
      %p53 = scmp.ne.s32.totalorder %s38, %s52
      %p54 = scmp.eq.s32.totalorder %s21, 0
      %p55 = por %p53, %p54
      %s56 = ssub.s32 %s22, %s34
      %s57 = ssub.s32 %s23, %s30
      %s58 = sor.u32 %s56, %s57
      %p59 = scmp.eq.s32.totalorder %s58, 0
      %s61 = sadd.s32 %s60, 1
      %s62 = scalar_select %p59, %s60, %s61
      %p65 = pneg %p59
      %p66 = scmp.eq.s32.totalorder %s15, 3
      %p67 = por %p65, %p66
      %p68 = scmp.ne.s32.totalorder %s60, %s63
      %p69 = scmp.eq.s32.totalorder %s15, 0
      %p70 = por %p68, %p69
      %p71 = scmp.ne.s32.totalorder %s60, %s63
      %p72 = scmp.eq.s32.totalorder %s20, 3
      %p73 = por %p71, %p72
      %p74 = scmp.ne.s32.totalorder %s63, %s64
      %p75 = scmp.eq.s32.totalorder %s20, 0
      %p76 = por %p74, %p75
      %p77 = scmp.ne.s32.totalorder %s63, %s64
      %p78 = scmp.eq.s32.totalorder %s21, 3
      %p79 = por %p77, %p78
      %p81 = scmp.ne.s32.totalorder %s64, %s80
      %p82 = scmp.eq.s32.totalorder %s21, 0
      %p83 = por %p81, %p82
      %s84 = ssub.s32 %s22, %s34
      %s85 = ssub.s32 %s23, %s30
      %s86 = sor.u32 %s84, %s85
      %p87 = scmp.eq.s32.totalorder %s86, 0
      %s89 = sadd.s32 %s88, 1
      %s90 = scalar_select %p87, %s88, %s89
      %p93 = pneg %p87
      %p94 = scmp.eq.s32.totalorder %s15, 3
      %p95 = por %p93, %p94
      %p96 = scmp.ne.s32.totalorder %s88, %s91
      %p97 = scmp.eq.s32.totalorder %s15, 0
      %p98 = por %p96, %p97
      %p99 = scmp.ne.s32.totalorder %s88, %s91
      %p100 = scmp.eq.s32.totalorder %s20, 3
      %p101 = por %p99, %p100
      %p102 = scmp.ne.s32.totalorder %s91, %s92
      %p103 = scmp.eq.s32.totalorder %s20, 0
      %p104 = por %p102, %p103
      %p105 = scmp.ne.s32.totalorder %s91, %s92
      %p106 = scmp.eq.s32.totalorder %s21, 3
      %p107 = por %p105, %p106
      %p109 = scmp.ne.s32.totalorder %s92, %s108
      %p110 = scmp.eq.s32.totalorder %s21, 0
      %p111 = por %p109, %p110
      %s112 = ssub.s32 %s22, %s34
      %s113 = ssub.s32 %s23, %s30
      %s114 = sor.u32 %s112, %s113
      %p115 = scmp.eq.s32.totalorder %s114, 0
      %s117 = sadd.s32 %s116, 1
      %s118 = scalar_select %p115, %s116, %s117
      %p121 = pneg %p115
      %p122 = scmp.eq.s32.totalorder %s15, 3
      %p123 = por %p121, %p122
      %p124 = scmp.ne.s32.totalorder %s116, %s119
      %p125 = scmp.eq.s32.totalorder %s15, 0
      %p126 = por %p124, %p125
      %p127 = scmp.ne.s32.totalorder %s116, %s119
      %p128 = scmp.eq.s32.totalorder %s20, 3
      %p129 = por %p127, %p128
      %p130 = scmp.ne.s32.totalorder %s119, %s120
      %p131 = scmp.eq.s32.totalorder %s20, 0
      %p132 = por %p130, %p131
      %p133 = scmp.ne.s32.totalorder %s119, %s120
      %p134 = scmp.eq.s32.totalorder %s21, 3
      %p135 = por %p133, %p134
      %p137 = scmp.ne.s32.totalorder %s120, %s136
      %p138 = scmp.eq.s32.totalorder %s21, 0
      %p139 = por %p137, %p138
      %p140 = scmp.le.s32.totalorder 1, %s15
      %p141 = scmp.lt.s32.totalorder %s15, 5
      %p142 = pnand %p140, %p141
      %p143 = pneg %p142
      // Predicated region
      $region9: #{tpu_custom_call.1} parent=5 // pred_check
        _
      $region10: #{tpu_custom_call.1} parent=5 // pred_check_branch
        %145 = sbr.rel (%p142) target = $region12
      $region11: #{tpu_custom_call.1} parent=5 // pred_region
        %s146 = ssub.s32 %s15, 1
        // Predicated region
        $region13: #{tpu_custom_call.1} parent=11 // pred_check
          %p147 = pneg %p48
        $region14: #{tpu_custom_call.1} parent=11 // pred_check_branch
          %149 = sbr.rel (%p147) target = $region16
        $region15: #{tpu_custom_call.1} parent=11 // pred_region
          _
        $region16: #{tpu_custom_call.1} parent=11 // pred_fallthru
          _
      $region12: #{tpu_custom_call.1} parent=5 // pred_fallthru
        _
      %p150 = scmp.lt.s32.totalorder %s15, 4
      // Predicated region
      $region17: #{tpu_custom_call.1} parent=5 // pred_check
        %p151 = pneg %p150
      $region18: #{tpu_custom_call.1} parent=5 // pred_check_branch
        %153 = sbr.rel (%p151) target = $region20
      $region19: #{tpu_custom_call.1} parent=5 // pred_region
        // Predicated region
        $region21: #{tpu_custom_call.1} parent=19 // pred_check
          %p154 = pneg %p70
        $region22: #{tpu_custom_call.1} parent=19 // pred_check_branch
          %156 = sbr.rel (%p154) target = $region24
        $region23: #{tpu_custom_call.1} parent=19 // pred_region
          %s157 = sand.u32 %s60, 1
          %s158 = sand.u32 %s60, 1
          %s159 = smul.addr %s158, 16
          %s160 = scalar_lea.vmem [#allocation2], %s159
          %s161 = smul.addr %s22, 8
          %s162 = sadd.s32 %s23, %s161
          %s163 = smul.addr %s162, 4
          %s164 = scalar_lea.vmem %s1, %s163
          // Predicated region
          $region25: #{tpu_custom_call.1} parent=23 // pred_check
            _
          $region26: #{tpu_custom_call.1} parent=23 // pred_check_branch
            %166 = sbr.rel (0) target = $region28
          $region27: #{tpu_custom_call.1} parent=23 // pred_region
            // Predicated region
            $region29: #{tpu_custom_call.1} parent=27 // pred_check
              _
            $region30: #{tpu_custom_call.1} parent=27 // pred_check_branch
              %168 = sbr.rel target = $region32
            $region31: #{tpu_custom_call.1} parent=27 // pred_region
              // Predicated region
              $region44: #{tpu_custom_call.1} parent=31 // pred_check
                _
              $region45: #{tpu_custom_call.1} parent=31 // pred_check_branch
                %189 = sbr.rel (0) target = $region47
              $region46: #{tpu_custom_call.1} parent=31 // pred_region
                loop: start=0, step=1, limit=1
                $region48: #{tpu_custom_call.1} parent=46 // loop_pre_header
                  _
                $region49: #{tpu_custom_call.1} parent=46 // loop_header
                  %s191 = sphi 0, %s195
                  %p192 = scmp.ge.s32.totalorder %s191, 1
                  %s196 = sphi %s164, %s164
                  %s197 = sphi %s160, %s160
                $region50: #{tpu_custom_call.1} parent=46 // loop_header_branch
                  %194 = sbr.rel (%p192) target = $region54
                $region51: #{tpu_custom_call.1} parent=46 // loop_body
                  _
                $region52: #{tpu_custom_call.1} parent=46 // loop_footer
                  %s195 = sadd.s32 1, %s191
                $region53: #{tpu_custom_call.1} parent=46 // loop_footer_branch
                  %190 = sbr.rel target = $region49
                $region54: #{tpu_custom_call.1} parent=46 // loop_exit
                  _
                loop: start=0, step=1, limit=1
                $region55: #{tpu_custom_call.1} parent=46 // loop_pre_header
                  _
                $region56: #{tpu_custom_call.1} parent=46 // loop_header
                  %s200 = sphi 0, %s204
                  %p201 = scmp.ge.s32.totalorder %s200, 1
                  %s205 = sphi %s164, %s164
                  %s206 = sphi %s160, %s160
                $region57: #{tpu_custom_call.1} parent=46 // loop_header_branch
                  %203 = sbr.rel (%p201) target = $region61
                $region58: #{tpu_custom_call.1} parent=46 // loop_body
                  %v207 = vld [vmem:[%s205] sm:$0xf]
                  %208 = vst [vmem:[%s206] sm:$0xf] %v207
                  %v209 = vld [vmem:[%s205 + $0x8] sm:$0xf]
                  %210 = vst [vmem:[%s206 + $0x4] sm:$0xf] %v209
                  %v211 = vld [vmem:[%s205 + $0x10] sm:$0xf]
                  %212 = vst [vmem:[%s206 + $0x8] sm:$0xf] %v211
                  %v213 = vld [vmem:[%s205 + $0x18] sm:$0xf]
                  %214 = vst [vmem:[%s206 + $0xc] sm:$0xf] %v213
                $region59: #{tpu_custom_call.1} parent=46 // loop_footer
                  %s204 = sadd.s32 1, %s200
                $region60: #{tpu_custom_call.1} parent=46 // loop_footer_branch
                  %199 = sbr.rel target = $region56
                $region61: #{tpu_custom_call.1} parent=46 // loop_exit
                  _
              $region47: #{tpu_custom_call.1} parent=31 // pred_fallthru
                _
            $region32: #{tpu_custom_call.1} parent=27 // pred_fallthru
              _
            // Predicated region
            $region33: #{tpu_custom_call.1} parent=27 // pred_check
              _
            $region34: #{tpu_custom_call.1} parent=27 // pred_check_branch
              %170 = sbr.rel (0) target = $region36
            $region35: #{tpu_custom_call.1} parent=27 // pred_region
              loop: start=0, step=1, limit=1
              $region37: #{tpu_custom_call.1} parent=35 // loop_pre_header
                _
              $region38: #{tpu_custom_call.1} parent=35 // loop_header
                %s173 = sphi 0, %s177
                %p174 = scmp.ge.s32.totalorder %s173, 1
                %s178 = sphi %s164, %s164
                %s179 = sphi %s160, %s160
              $region39: #{tpu_custom_call.1} parent=35 // loop_header_branch
                %176 = sbr.rel (%p174) target = $region43
              $region40: #{tpu_custom_call.1} parent=35 // loop_body
                %v180 = vld [vmem:[%s178] sm:$0xf]
                %181 = vst [vmem:[%s179] sm:$0xf] %v180
                %v182 = vld [vmem:[%s178 + $0x8] sm:$0xf]
                %183 = vst [vmem:[%s179 + $0x4] sm:$0xf] %v182
                %v184 = vld [vmem:[%s178 + $0x10] sm:$0xf]
                %185 = vst [vmem:[%s179 + $0x8] sm:$0xf] %v184
                %v186 = vld [vmem:[%s178 + $0x18] sm:$0xf]
                %187 = vst [vmem:[%s179 + $0xc] sm:$0xf] %v186
              $region41: #{tpu_custom_call.1} parent=35 // loop_footer
                %s177 = sadd.s32 1, %s173
              $region42: #{tpu_custom_call.1} parent=35 // loop_footer_branch
                %172 = sbr.rel target = $region38
              $region43: #{tpu_custom_call.1} parent=35 // loop_exit
                _
            $region36: #{tpu_custom_call.1} parent=27 // pred_fallthru
              _
          $region28: #{tpu_custom_call.1} parent=23 // pred_fallthru
            _
          %215 = vnop
        $region24: #{tpu_custom_call.1} parent=19 // pred_fallthru
          _
        // Predicated region
        $region62: #{tpu_custom_call.1} parent=19 // pred_check
          %p216 = pneg %p98
        $region63: #{tpu_custom_call.1} parent=19 // pred_check_branch
          %218 = sbr.rel (%p216) target = $region65
        $region64: #{tpu_custom_call.1} parent=19 // pred_region
          %s219 = sand.u32 %s88, 1
          %s220 = scalar_lea.sflag [#allocation4], %s219
          %s221 = sand.u32 %s88, 1
          %s222 = smul.addr %s221, 8
          %s223 = scalar_lea.vmem [#allocation3], %s222
          %s225 = ssub.s32 128, 128
          %226 = vsyncadd %s220, %s225
          %s227 = smul.addr %s22, 2
          %s228 = sadd.s32 %s23, %s227
          %s229 = smul.addr %s228, 128
          %s230 = scalar_lea.hbm %s2, %s229
          %s232 = sshll.u32 %s223, 4
          %s233 = int_to_ptr.vmem [resolvable:$true] %s232
          %235 = dma.hbm_to_vmem [thread:$0]  %s230, 128, %s233, %s220
        $region65: #{tpu_custom_call.1} parent=19 // pred_fallthru
          _
      $region20: #{tpu_custom_call.1} parent=5 // pred_fallthru
        _
      %p236 = scmp.le.s32.totalorder 1, %s15
      %p237 = scmp.lt.s32.totalorder %s15, 5
      %p238 = pnand %p236, %p237
      %p239 = pneg %p238
      // Predicated region
      $region66: #{tpu_custom_call.1} parent=5 // pred_check
        _
      $region67: #{tpu_custom_call.1} parent=5 // pred_check_branch
        %241 = sbr.rel (%p238) target = $region69
      $region68: #{tpu_custom_call.1} parent=5 // pred_region
        %s242 = ssub.s32 %s15, 1
        %s243 = sand.u32 %s63, 1
        %s244 = sand.u32 %s63, 1
        %s245 = smul.addr %s244, 16
        %s246 = scalar_lea.vmem [#allocation2], %s245
        // Predicated region
        $region70: #{tpu_custom_call.1} parent=68 // pred_check
          %p247 = pneg %p76
        $region71: #{tpu_custom_call.1} parent=68 // pred_check_branch
          %249 = sbr.rel (%p247) target = $region73
        $region72: #{tpu_custom_call.1} parent=68 // pred_region
          _
        $region73: #{tpu_custom_call.1} parent=68 // pred_fallthru
          _
        %s250 = sand.u32 %s91, 1
        %s251 = scalar_lea.sflag [#allocation4], %s250
        %s252 = sand.u32 %s91, 1
        %s253 = smul.addr %s252, 8
        %s254 = scalar_lea.vmem [#allocation3], %s253
        // Predicated region
        $region74: #{tpu_custom_call.1} parent=68 // pred_check
          %p255 = pneg %p104
        $region75: #{tpu_custom_call.1} parent=68 // pred_check_branch
          %257 = sbr.rel (%p255) target = $region77
        $region76: #{tpu_custom_call.1} parent=68 // pred_region
          %258 = dma.done %s251, 128
        $region77: #{tpu_custom_call.1} parent=68 // pred_fallthru
          _
        %p259 = pneg %p48
        %p260 = pneg %p45
        %s261 = sand.u32 %s63, 1
        %s262 = sand.u32 %s63, 1
        %s263 = smul.addr %s262, 16
        %s264 = scalar_lea.vmem [#allocation2], %s263
        %p265 = pneg %p76
        %p266 = pneg %p73
        %s267 = sand.u32 %s91, 1
        %s268 = scalar_lea.sflag [#allocation4], %s267
        %s269 = sand.u32 %s91, 1
        %s270 = smul.addr %s269, 8
        %s271 = scalar_lea.vmem [#allocation3], %s270
        %p272 = pneg %p104
        %p273 = pneg %p101
        %p274 = pneg %p132
        %p275 = pneg %p129
        %s276 = sand.u32 %s119, 1
        %s277 = scalar_lea.sflag [#allocation5], %s276
        %s278 = sand.u32 %s119, 1
        %s279 = smul.addr %s278, 8
        %s280 = scalar_lea.vmem [#allocation6], %s279
        %v282 = vld [vmem:[%s0] sm:$0xf]
        %v283 = vld [vmem:[%s254] sm:$0xff]
        %v284 = vld [vmem:[%s246] sm:$0xf]
        %v285 = vld [vmem:[%s246 + $0x4] sm:$0xf]
        %v286 = vld [vmem:[%s246 + $0x8] sm:$0xf]
        %v287 = vld [vmem:[%s246 + $0xc] sm:$0xf]
        %v292 = vunpack.c.l.b16 %v284
        %v293 = vunpack.c.l.b16 %v285
        %v294 = vunpack.c.l.b16 %v286
        %v295 = vunpack.c.l.b16 %v287
        %v296 = vpack.c.b16 %v293, %v292
        %v297 = vpack.c.b16 %v295, %v294
        %vm300 = vcmask 261120
        %v302 = vsel %vm300, %v282, 0
        %304 = vmatprep.subr.bf16.mxu0 0
        %305 = vmatpush1.bf16.msra.mxu0 %v296
        %306 = vmatprep.subr.bf16.mxu0 0
        %307 = vmatpush1.bf16.msra.mxu0 %v297
        %308 = vmatprep.subr.bf16.mxu0 0
        %309 = vmatpush1.bf16.msra.mxu0 0
        %310 = vmatprep.subr.bf16.mxu0 0
        %311 = vmatpush1.bf16.msra.mxu0 0
        %312 = vmatprep.subr.bf16.mxu0 0
        %313 = vmatpush1.bf16.msra.mxu0 0
        %314 = vmatprep.subr.bf16.mxu0 0
        %315 = vmatpush1.bf16.msra.mxu0 0
        %316 = vmatprep.subr.bf16.mxu0 0
        %317 = vmatpush1.bf16.msra.mxu0 0
        %318 = vmatprep.subr.bf16.mxu0 0
        %319 = vmatpush1.bf16.msra.mxu0 0
        %320 = vmatprep.subr.bf16.mxu0 0
        %321 = vmatpush1.bf16.msra.mxu0 0
        %322 = vmatprep.subr.bf16.mxu0 0
        %323 = vmatpush1.bf16.msra.mxu0 0
        %324 = vmatprep.subr.bf16.mxu0 0
        %325 = vmatpush1.bf16.msra.mxu0 0
        %326 = vmatprep.subr.bf16.mxu0 0
        %327 = vmatpush1.bf16.msra.mxu0 0
        %328 = vmatprep.subr.bf16.mxu0 0
        %329 = vmatpush1.bf16.msra.mxu0 0
        %330 = vmatprep.subr.bf16.mxu0 0
        %331 = vmatpush1.bf16.msra.mxu0 0
        %332 = vmatprep.subr.bf16.mxu0 0
        %333 = vmatpush1.bf16.msra.mxu0 0
        %334 = vmatprep.subr.bf16.mxu0 0
        %335 = vmatpush1.bf16.msra.mxu0 0
        %336 = vmatprep.mubr.bf16.mxu0 0
        %337 = vmatmul.mubr.bf16.gmra.mrb[0].mxu0 %v302
        %v338 = vpop.f32.mrb[0].mxu0
        %v339 = vadd.f32 0.0, %v338
        %v340 = vpop.f32.mrb[0].mxu0
        %v341 = vpop.f32.mrb[0].mxu0
        %v342 = vpop.f32.mrb[0].mxu0
        %343 = vdwg.mxu0
        %v344 = vadd.f32 %v283, %v339
        %345 = vst [vmem:[%s280] sm:$0xff] %v344
        %s346 = sand.u32 %s119, 1
        %s347 = scalar_lea.sflag [#allocation5], %s346
        %s348 = sand.u32 %s119, 1
        %s349 = smul.addr %s348, 8
        %s350 = scalar_lea.vmem [#allocation6], %s349
        // Predicated region
        $region78: #{tpu_custom_call.1} parent=68 // pred_check
          %p351 = pneg %p129
        $region79: #{tpu_custom_call.1} parent=68 // pred_check_branch
          %353 = sbr.rel (%p351) target = $region81
        $region80: #{tpu_custom_call.1} parent=68 // pred_region
          %s355 = ssub.s32 128, 128
          %356 = vsyncadd %s347, %s355
          %s357 = smul.addr %s24, 2
          %s358 = sadd.s32 %s25, %s357
          %s359 = smul.addr %s358, 128
          %s360 = scalar_lea.hbm %s3, %s359
          %s362 = sshll.u32 %s350, 4
          %s363 = int_to_ptr.vmem [resolvable:$true] %s362
          %365 = dma.vmem_to_hbm [thread:$0]  %s363, 128, %s360, %s347
        $region81: #{tpu_custom_call.1} parent=68 // pred_fallthru
          _
      $region69: #{tpu_custom_call.1} parent=5 // pred_fallthru
        _
      %p366 = scmp.le.s32.totalorder 2, %s15
      // Predicated region
      $region82: #{tpu_custom_call.1} parent=5 // pred_check
        %p367 = pneg %p366
      $region83: #{tpu_custom_call.1} parent=5 // pred_check_branch
        %369 = sbr.rel (%p367) target = $region85
      $region84: #{tpu_custom_call.1} parent=5 // pred_region
        %s370 = ssub.s32 %s15, 2
        // Predicated region
        $region86: #{tpu_custom_call.1} parent=84 // pred_check
          %p371 = pneg %p135
        $region87: #{tpu_custom_call.1} parent=84 // pred_check_branch
          %373 = sbr.rel (%p371) target = $region89
        $region88: #{tpu_custom_call.1} parent=84 // pred_region
          %s374 = sand.u32 %s120, 1
          %s375 = scalar_lea.sflag [#allocation5], %s374
          %s376 = sand.u32 %s120, 1
          %s377 = smul.addr %s376, 8
          %s378 = scalar_lea.vmem [#allocation6], %s377
          %379 = dma.done %s375, 128
        $region89: #{tpu_custom_call.1} parent=84 // pred_fallthru
          _
      $region85: #{tpu_custom_call.1} parent=5 // pred_fallthru
        _
    $region6: #{tpu_custom_call.1} parent=1 // loop_footer
      %s19 = sadd.s32 1, %s15
    $region7: #{tpu_custom_call.1} parent=1 // loop_footer_branch
      %14 = sbr.rel target = $region3
    $region8: #{tpu_custom_call.1} parent=1 // loop_exit
      _
    %380 = vsyncpa [#allocation4], 1
    %s381 = scalar_lea.sflag [#allocation4], 1
    %382 = vsyncpa %s381, 1
    %383 = vsyncpa [#allocation5], 1
    %s384 = scalar_lea.sflag [#allocation5], 1
    %385 = vsyncpa %s384, 1

</llo_original>
